<compile_context>
chip_gen: v5e
topology: v5e:2x2
jax: 0.10.0
libtpu: 0.0.40
codegen_flags: <defaults>
</compile_context>

<pallas_src>
import math

import jax
import jax.numpy as jnp
from jax.experimental import pallas as pl
from jax.experimental.pallas import tpu as pltpu


def _make_stats_kernel(l_total, l_tile, use_fold):
    inv_n = 1.0 / float(l_total)
    # Unbiased variance divisor (torch.var default). L == 1 -> nan, like torch.
    inv_denom = 1.0 / float(l_total - 1) if l_total > 1 else float("nan")

    def kernel(x_ref, o_ref, sum_acc, sq_acc):
        k = pl.program_id(1)

        @pl.when(k == 0)
        def _init():
            sum_acc[...] = jnp.zeros_like(sum_acc)
            sq_acc[...] = jnp.zeros_like(sq_acc)

        # Widen to f32 immediately (bf16-safe accumulation on all generations).
        xf = x_ref[...].astype(jnp.float32)           # (m_tile, l_tile)

        if use_fold:
            # VPU lane-fold: elementwise adds of 128-wide slices into the
            # (m_tile, 128) partial sums; no cross-lane reduce in the hot loop.
            ps = sum_acc[...]
            pq = sq_acc[...]
            for j in range(l_tile // 128):
                c = xf[:, j * 128:(j + 1) * 128]
                ps = ps + c
                pq = pq + c * c
            sum_acc[...] = ps
            sq_acc[...] = pq
        else:
            # Small / 128-unaligned L: plain reduce of the whole tile.
            sum_acc[...] += jnp.sum(xf, axis=-1, keepdims=True)
            sq_acc[...] += jnp.sum(xf * xf, axis=-1, keepdims=True)

        @pl.when(k == pl.num_programs(1) - 1)
        def _finalize():
            s = jnp.sum(sum_acc[...], axis=-1, keepdims=True)     # (m_tile, 1)
            ss = jnp.sum(sq_acc[...], axis=-1, keepdims=True)     # (m_tile, 1)
            mean = s * jnp.float32(inv_n)
            var = (ss - s * mean) * jnp.float32(inv_denom)
            o_ref[:, 0:1] = mean.astype(o_ref.dtype)
            o_ref[:, 1:2] = var.astype(o_ref.dtype)

    return kernel


def _stats_core(x2):
    """x2: (M, L) -> (M, 2) with [:, 0] = mean, [:, 1] = unbiased var over L."""
    M, L = x2.shape
    itemsize = x2.dtype.itemsize
    sub = 8 if itemsize >= 4 else (16 if itemsize == 2 else 32)

    # Reduction-axis (lane) tile: large and 128-aligned when possible.
    if L % 128 == 0:
        l_tile = min(L, 4096)
        while L % l_tile != 0:
            l_tile -= 128
        use_fold = True
    else:
        l_tile = L            # full extent (allowed by the block-shape rule)
        use_fold = False

    # Row (sublane) tile: multiple of `sub`, capped by a ~8 MiB/tile budget so
    # double buffering fits scoped VMEM on v5e/v6e/v7x alike.
    tile_budget = 8 * 1024 * 1024
    if M % sub == 0:
        rows_cap = max(sub, (tile_budget // max(1, l_tile * itemsize)) // sub * sub)
        m_tile = min(M, 256, rows_cap)
        m_tile = max(sub, (m_tile // sub) * sub)
        while M % m_tile != 0:
            m_tile -= sub
    else:
        m_tile = M            # full extent fallback

    grid = (M // m_tile, pl.cdiv(L, l_tile))
    acc_w = 128 if use_fold else 1
    kernel = _make_stats_kernel(L, l_tile, use_fold)

    return pl.pallas_call(
        kernel,
        out_shape=jax.ShapeDtypeStruct((M, 2), x2.dtype),
        grid_spec=pltpu.PrefetchScalarGridSpec(
            num_scalar_prefetch=0,
            grid=grid,
            in_specs=[pl.BlockSpec((m_tile, l_tile), lambda i, k: (i, k))],
            out_specs=pl.BlockSpec((m_tile, 2), lambda i, k: (i, 0)),
            scratch_shapes=[
                pltpu.VMEM((m_tile, acc_w), jnp.float32),   # running sum
                pltpu.VMEM((m_tile, acc_w), jnp.float32),   # running sum of squares
            ],
        ),
        compiler_params=pltpu.CompilerParams(
            dimension_semantics=("parallel", "arbitrary"),
            vmem_limit_bytes=32 * 1024 * 1024,
        ),
    )(x2)


def global_statistics_pool1d(x, dim=-1, *, min_pallas_bytes=1 << 20):
    """JAX/Pallas equivalent of GlobalStatisticsPool1d.forward."""
    ndim = x.ndim
    dim = dim % ndim

    # Small-input fast path: kernel launch/DMA setup dwarfs the work here.
    if x.size * x.dtype.itemsize < min_pallas_bytes:
        mean = jnp.mean(x, axis=dim)
        var = jnp.var(x, axis=dim, ddof=1)
        return jnp.stack([mean, var], axis=dim)

    if dim != ndim - 1:
        x = jnp.moveaxis(x, dim, -1)
    lead_shape = x.shape[:-1]
    L = x.shape[-1]
    M = math.prod(lead_shape) if lead_shape else 1

    stats = _stats_core(x.reshape(M, L))           # (M, 2)
    out = stats.reshape(*lead_shape, 2)            # (..., 2)
    if dim != ndim - 1:
        out = jnp.moveaxis(out, -1, dim)           # match torch.stack(dim=dim)
    return out


if __name__ == "__main__":
    key = jax.random.PRNGKey(0)
    B, C, L = 2, 4, 16
    x = jax.random.normal(key, (B, C, L), dtype=jnp.float32)

    # min_pallas_bytes=0 forces the Pallas kernel path even at this toy size.
    out = global_statistics_pool1d(x, min_pallas_bytes=0)
    out = jax.block_until_ready(out)

    mean_ref = jnp.mean(x, axis=-1)
    var_ref = jnp.var(x, axis=-1, ddof=1)          # unbiased, like torch.var
    ref = jnp.stack([mean_ref, var_ref], axis=-1)

    assert out.shape == (B, C, 2)
    assert jnp.allclose(out, ref, atol=1e-4, rtol=1e-4)

    print("KERNEL_OK")
</pallas_src>

<mosaic_0001>
module attributes {stable_mosaic.version = 11 : i64} {
  func.func @kernel(%arg0: i32, %arg1: i32, %arg2: memref<8x16xf32, #tpu.memory_space<vmem>>, %arg3: memref<8x2xf32, #tpu.memory_space<vmem>>, %arg4: memref<8x1xf32, #tpu.memory_space<vmem>>, %arg5: memref<8x1xf32, #tpu.memory_space<vmem>>) attributes {dimension_semantics = [#tpu.dimension_semantics<parallel>, #tpu.dimension_semantics<arbitrary>], iteration_bounds = array<i64: 1, 1>, scalar_prefetch = 0 : i64, scratch_operands = 2 : i64, tpu.core_type = #tpu.core_type<tc>, window_params = [{transform_indices = @transform_0, window_bounds = array<i64: 8, 16>}, {transform_indices = @transform_1, window_bounds = array<i64: 8, 2>}]} {
    %c0_i32 = arith.constant 0 : i32
    %0 = arith.cmpi eq, %arg1, %c0_i32 : i32
    %1 = arith.extui %0 : i1 to i32
    %c0_i32_0 = arith.constant 0 : i32
    %2 = arith.cmpi ne, %1, %c0_i32_0 : i32
    scf.if %2 {
      %cst_13 = arith.constant 0.000000e+00 : f32
      %18 = vector.broadcast %cst_13 : f32 to vector<8x1xf32>
      %c0_14 = arith.constant 0 : index
      %c0_15 = arith.constant 0 : index
      %19 = vector.load %arg4[%c0_14, %c0_15] : memref<8x1xf32, #tpu.memory_space<vmem>>, vector<8x1xf32>
      tpu.vector_store %arg4[%c0_14, %c0_15], %18 {strides = array<i32>} : memref<8x1xf32, #tpu.memory_space<vmem>>, vector<8x1xf32>,
      %cst_16 = arith.constant 0.000000e+00 : f32
      %20 = vector.broadcast %cst_16 : f32 to vector<8x1xf32>
      %c0_17 = arith.constant 0 : index
      %c0_18 = arith.constant 0 : index
      %21 = vector.load %arg5[%c0_17, %c0_18] : memref<8x1xf32, #tpu.memory_space<vmem>>, vector<8x1xf32>
      tpu.vector_store %arg5[%c0_17, %c0_18], %20 {strides = array<i32>} : memref<8x1xf32, #tpu.memory_space<vmem>>, vector<8x1xf32>,
    } else {
    }
    %c0 = arith.constant 0 : index
    %c0_1 = arith.constant 0 : index
    %3 = vector.load %arg2[%c0, %c0_1] : memref<8x16xf32, #tpu.memory_space<vmem>>, vector<8x16xf32>
    %c0_2 = arith.constant 0 : index
    %c0_3 = arith.constant 0 : index
    %4 = vector.load %arg4[%c0_2, %c0_3] : memref<8x1xf32, #tpu.memory_space<vmem>>, vector<8x1xf32>
    %cst = arith.constant dense<0.000000e+00> : vector<8xf32>
    %5 = vector.multi_reduction <add>, %3, %cst [1] : vector<8x16xf32> to vector<8xf32>
    %6 = vector.shape_cast %5 : vector<8xf32> to vector<8x1xf32>
    %7 = arith.addf %4, %6 : vector<8x1xf32>
    %c0_4 = arith.constant 0 : index
    %c0_5 = arith.constant 0 : index
    %8 = vector.load %arg4[%c0_4, %c0_5] : memref<8x1xf32, #tpu.memory_space<vmem>>, vector<8x1xf32>
    tpu.vector_store %arg4[%c0_4, %c0_5], %7 {strides = array<i32>} : memref<8x1xf32, #tpu.memory_space<vmem>>, vector<8x1xf32>,
    %c0_6 = arith.constant 0 : index
    %c0_7 = arith.constant 0 : index
    %9 = vector.load %arg5[%c0_6, %c0_7] : memref<8x1xf32, #tpu.memory_space<vmem>>, vector<8x1xf32>
    %10 = arith.mulf %3, %3 : vector<8x16xf32>
    %cst_8 = arith.constant dense<0.000000e+00> : vector<8xf32>
    %11 = vector.multi_reduction <add>, %10, %cst_8 [1] : vector<8x16xf32> to vector<8xf32>
    %12 = vector.shape_cast %11 : vector<8xf32> to vector<8x1xf32>
    %13 = arith.addf %9, %12 : vector<8x1xf32>
    %c0_9 = arith.constant 0 : index
    %c0_10 = arith.constant 0 : index
    %14 = vector.load %arg5[%c0_9, %c0_10] : memref<8x1xf32, #tpu.memory_space<vmem>>, vector<8x1xf32>
    tpu.vector_store %arg5[%c0_9, %c0_10], %13 {strides = array<i32>} : memref<8x1xf32, #tpu.memory_space<vmem>>, vector<8x1xf32>,
    %c0_i32_11 = arith.constant 0 : i32
    %15 = arith.cmpi eq, %arg1, %c0_i32_11 : i32
    %16 = arith.extui %15 : i1 to i32
    %c0_i32_12 = arith.constant 0 : i32
    %17 = arith.cmpi ne, %16, %c0_i32_12 : i32
    scf.if %17 {
      %c0_13 = arith.constant 0 : index
      %c0_14 = arith.constant 0 : index
      %18 = vector.load %arg4[%c0_13, %c0_14] : memref<8x1xf32, #tpu.memory_space<vmem>>, vector<8x1xf32>
      %cst_15 = arith.constant dense<0.000000e+00> : vector<8xf32>
      %19 = vector.multi_reduction <add>, %18, %cst_15 [1] : vector<8x1xf32> to vector<8xf32>
      %20 = vector.shape_cast %19 : vector<8xf32> to vector<8x1xf32>
      %c0_16 = arith.constant 0 : index
      %c0_17 = arith.constant 0 : index
      %21 = vector.load %arg5[%c0_16, %c0_17] : memref<8x1xf32, #tpu.memory_space<vmem>>, vector<8x1xf32>
      %cst_18 = arith.constant dense<0.000000e+00> : vector<8xf32>
      %22 = vector.multi_reduction <add>, %21, %cst_18 [1] : vector<8x1xf32> to vector<8xf32>
      %23 = vector.shape_cast %22 : vector<8xf32> to vector<8x1xf32>
      %cst_19 = arith.constant 6.250000e-02 : f32
      %24 = vector.broadcast %cst_19 : f32 to vector<8x1xf32>
      %25 = arith.mulf %20, %24 : vector<8x1xf32>
      %26 = arith.mulf %20, %25 : vector<8x1xf32>
      %27 = arith.subf %23, %26 : vector<8x1xf32>
      %cst_20 = arith.constant 0.0666666701 : f32
      %28 = vector.broadcast %cst_20 : f32 to vector<8x1xf32>
      %29 = arith.mulf %27, %28 : vector<8x1xf32>
      %c0_21 = arith.constant 0 : index
      %c0_22 = arith.constant 0 : index
      %30 = vector.load %arg3[%c0_21, %c0_22] : memref<8x2xf32, #tpu.memory_space<vmem>>, vector<8x1xf32>
      tpu.vector_store %arg3[%c0_21, %c0_22], %25 {strides = array<i32>} : memref<8x2xf32, #tpu.memory_space<vmem>>, vector<8x1xf32>,
      %c0_23 = arith.constant 0 : index
      %c1 = arith.constant 1 : index
      %31 = vector.load %arg3[%c0_23, %c1] : memref<8x2xf32, #tpu.memory_space<vmem>>, vector<8x1xf32>
      tpu.vector_store %arg3[%c0_23, %c1], %29 {strides = array<i32>} : memref<8x2xf32, #tpu.memory_space<vmem>>, vector<8x1xf32>,
    } else {
    }
    return
  }
  func.func @transform_0(%arg0: i32, %arg1: i32) -> (i32, i32) {
    %c0_i32 = arith.constant 0 : i32
    return %arg0, %arg1 : i32, i32
  }
  func.func @transform_1(%arg0: i32, %arg1: i32) -> (i32, i32) {
    %c0_i32 = arith.constant 0 : i32
    %c0_i32_0 = arith.constant 0 : i32
    return %arg0, %c0_i32 : i32, i32
  }
}

</mosaic_0001>

<llo_original>
// kernel: tpu_custom_call.1
$region0: #{tpu_custom_call.1}
  #allocation0 [shape = 'u32[]', space=smem, size = 0x4, offset = 0x4, fixed_abs, tag = 'smem constant byte address 0x4 - core index']
  #allocation1 [shape = 'u32[72,128]{1,0:T(1,128)}', space=vmem, size = 0x9000, scoped, tag = 'internal scratch']
  #allocation2 [shape = 'f32[8,1]{1,0:T(8,128)}', space=vmem, size = 0x1000, scoped, tag = 'scratch operand']
  #allocation3 [shape = 'f32[8,1]{1,0:T(8,128)}', space=vmem, size = 0x1000, scoped, tag = 'scratch operand']
  %s0 = inlined_call_operand.hbm [shape: f32[8,16], index: 0, kind: input, shape index: {}]
  %s1 = inlined_call_operand.vmem [shape: f32[8,2], index: 1, kind: output, shape index: {}]
  %s2 = sld [smem:[#allocation0]]
  $region26: #{tpu_custom_call.1} parent=0
    _
  %s4 = ssub.s32 1, %s2
  %s5 = scalar_select 0, %s4, %s2
  $region1: #{tpu_custom_call.1} parent=0
    #allocation4 [shape = 'u8[4096]{0}', space=vmem, size = 0x1000, scoped, tag = 'input window, operand 0, single buffered']
    #allocation5 [shape = 's32[1]{0}', space=sflag, size = 0x4, scoped, tag = 'scoped memory for tpu_custom_call.1']
    %6 = vsyncpa [#allocation5], 0
    // Predicated region
    $region2: #{tpu_custom_call.1} parent=1 // pred_check
      _
    $region3: #{tpu_custom_call.1} parent=1 // pred_check_branch
      %8 = sbr.rel (0) target = $region5
    $region4: #{tpu_custom_call.1} parent=1 // pred_region
      %10 = vsyncadd [#allocation5], 0
      %s12 = sshll.u32 %s0, 4
      %s13 = int_to_ptr.hbm [resolvable:$true] %s12
      %s14 = sshll.u32 [#allocation4], 4
      %s15 = int_to_ptr.vmem [resolvable:$true] %s14
      %17 = dma.hbm_to_vmem [thread:$0]  %s13, 128, %s15, [#allocation5]
    $region5: #{tpu_custom_call.1} parent=1 // pred_fallthru
      _
    // Predicated region
    $region6: #{tpu_custom_call.1} parent=1 // pred_check
      _
    $region7: #{tpu_custom_call.1} parent=1 // pred_check_branch
      %19 = sbr.rel (0) target = $region9
    $region8: #{tpu_custom_call.1} parent=1 // pred_region
      %21 = dma.done [#allocation5], 128
    $region9: #{tpu_custom_call.1} parent=1 // pred_fallthru
      _
    %p22 = scmp.eq.s32.totalorder 0, 0
    // Predicated region
    $region10: #{tpu_custom_call.1} parent=1 // pred_check
      %p23 = pneg %p22
    $region11: #{tpu_custom_call.1} parent=1 // pred_check_branch
      %25 = sbr.rel (%p23) target = $region13
    $region12: #{tpu_custom_call.1} parent=1 // pred_region
      %vm26 = vcmask 7168
      %27 = vst.msk [vmem:[#allocation2] sm:$0xff] %vm26, 0.0
      %28 = vst.msk [vmem:[#allocation3] sm:$0xff] %vm26, 0.0
    $region13: #{tpu_custom_call.1} parent=1 // pred_fallthru
      _
    %v29 = vld [vmem:[#allocation4] sm:$0xff]
    %v30 = vld [vmem:[#allocation2] sm:$0xff]
    %vm31 = vcmask 130048
    %v32 = vsel %vm31, %v29, 0.0
    %33 = vadd.xlane.f32.xlu0 %v32
    %v34 = vpop.xlane.xlu0 %33
    %v35 = vadd.f32 %v30, %v34
    %vm36 = vcmask 7168
    %37 = vst.msk [vmem:[#allocation2] sm:$0xff] %vm36, %v35
    %v38 = vld [vmem:[#allocation3] sm:$0xff]
    %v39 = vmul.f32 %v29, %v29
    %v40 = vsel %vm31, %v39, 0.0
    %41 = vadd.xlane.f32.xlu0 %v40
    %v42 = vpop.xlane.xlu0 %41
    %v43 = vadd.f32 %v38, %v42
    %44 = vst.msk [vmem:[#allocation3] sm:$0xff] %vm36, %v43
    // Predicated region
    $region14: #{tpu_custom_call.1} parent=1 // pred_check
      %p45 = pneg %p22
    $region15: #{tpu_custom_call.1} parent=1 // pred_check_branch
      %47 = sbr.rel (%p45) target = $region17
    $region16: #{tpu_custom_call.1} parent=1 // pred_region
      %v48 = vld [vmem:[#allocation2] sm:$0xff]
      %v49 = vadd.f32 %v48, 0.0
      %v50 = vld [vmem:[#allocation3] sm:$0xff]
      %v51 = vadd.f32 %v50, 0.0
      %v52 = vmul.f32 %v49, 0.0625
      %v53 = vmul.f32 %v49, %v52
      %v54 = vsub.f32 %v51, %v53
      %v55 = vmul.f32 %v54, 0.06666667
      %56 = vst.msk [vmem:[%s1] sm:$0xff] %vm36, %v52
      %58 = vrot.lane.b32.xlu0 %v55, 1
      %v59 = vpop.permute.xlu0 %58
      %vm61 = vcmask 15368
      %62 = vst.msk [vmem:[%s1] sm:$0xff] %vm61, %v59
    $region17: #{tpu_custom_call.1} parent=1 // pred_fallthru
      _
    // Predicated region
    $region18: #{tpu_custom_call.1} parent=1 // pred_check
      _
    $region19: #{tpu_custom_call.1} parent=1 // pred_check_branch
      %64 = sbr.rel (0) target = $region21
    $region20: #{tpu_custom_call.1} parent=1 // pred_region
      _
    $region21: #{tpu_custom_call.1} parent=1 // pred_fallthru
      _
    // Predicated region
    $region22: #{tpu_custom_call.1} parent=1 // pred_check
      _
    $region23: #{tpu_custom_call.1} parent=1 // pred_check_branch
      %66 = sbr.rel (0) target = $region25
    $region24: #{tpu_custom_call.1} parent=1 // pred_region
      _
    $region25: #{tpu_custom_call.1} parent=1 // pred_fallthru
      _
    %67 = vsyncpa [#allocation5], 1

</llo_original>
